<compile_context>
chip_gen: v6e
topology: v6e:2x2x1
jax: 0.10.0
libtpu: 0.0.40
codegen_flags: <defaults>
</compile_context>

<pallas_src>
import functools

import jax
import jax.numpy as jnp
from jax import lax
from jax.experimental import pallas as pl
from jax.experimental.pallas import tpu as pltpu

EPS = 1e-5
LANE = 128
# Pad D to a lane multiple only when it is tiny; for larger unaligned D the extra
# pad/slice HBM passes cost more than the masked tail stores they would avoid.
PAD_D_BELOW = 256
TARGET_TILE_BYTES = 4 << 20   # per pipeline buffer (measured ~86% roofline plateau)
MIN_GRID_STEPS = 8            # keep megacore sharding + pipelining alive


def _cdiv(a, b):
    return -(-a // b)


def _round_up(x, m):
    return _cdiv(x, m) * m


def _sublane_multiple(dtype):
    # f32 -> 8, bf16 -> 16, int8/fp8 -> 32 (sub-32-bit packs along sublanes).
    itemsize = jnp.dtype(dtype).itemsize
    return 8 * max(1, 4 // itemsize)


def _vmem_limit_bytes():
    try:
        physical = int(pltpu.get_tpu_info().vmem_capacity_bytes)
    except Exception:
        physical = 128 << 20
    # 64 MiB on 128-MiB-VMEM chips (v5e/v6e; above their 16/32 MiB scoped defaults),
    # 32 MiB on v7x (64 MiB physical per TensorCore).
    return min(64 << 20, physical // 2)


def _pick_block_rows(rows, d_block, dtype, vmem_limit):
    sub = _sublane_multiple(dtype)
    itemsize = jnp.dtype(dtype).itemsize
    # Per-row VMEM: 4 pipeline buffers (2 in + 2 out) in the input dtype plus ~3
    # f32 tile-sized temporaries live inside the kernel body.
    bytes_per_row = d_block * (4 * itemsize + 3 * 4)
    br_ws = int(0.6 * vmem_limit) // bytes_per_row          # working-set bound
    br_tile = TARGET_TILE_BYTES // (d_block * itemsize)     # per-buffer byte cap
    br = min(br_ws, br_tile)
    # Keep >= MIN_GRID_STEPS grid steps when rows allow (v7x megacore + pipelining).
    br = min(br, max(sub, _round_up(_cdiv(rows, MIN_GRID_STEPS), sub)))
    br = max(sub, (br // sub) * sub)
    br = min(br, _round_up(rows, sub))
    return max(br, sub)


def _ln_kernel(x_ref, g_ref, b_ref, o_ref):
    # x_ref: (TM, D) tile; g_ref/b_ref: (1, D); D is the true feature dim.
    x = x_ref[...].astype(jnp.float32)
    inv_d = 1.0 / x.shape[-1]
    mean = jnp.sum(x, axis=-1, keepdims=True) * inv_d
    centered = x - mean
    var = jnp.sum(centered * centered, axis=-1, keepdims=True) * inv_d
    inv = lax.rsqrt(var + EPS)
    y = centered * inv * g_ref[...].astype(jnp.float32) + b_ref[...].astype(jnp.float32)
    o_ref[...] = y.astype(o_ref.dtype)


def _ln_kernel_masked(x_ref, g_ref, b_ref, m_ref, o_ref, *, d_valid):
    # Tiny-D path: x lane-padded with zeros beyond d_valid; the precomputed 0/1 mask
    # re-zeroes those lanes after centering so variance only sees the true D columns.
    x = x_ref[...].astype(jnp.float32)
    inv_d = 1.0 / d_valid
    mean = jnp.sum(x, axis=-1, keepdims=True) * inv_d
    centered = (x - mean) * m_ref[...]
    var = jnp.sum(centered * centered, axis=-1, keepdims=True) * inv_d
    inv = lax.rsqrt(var + EPS)
    y = centered * inv * g_ref[...].astype(jnp.float32) + b_ref[...].astype(jnp.float32)
    o_ref[...] = y.astype(o_ref.dtype)


@functools.partial(jax.jit, static_argnames=("block_rows",))
def my_layernorm(x, gamma, beta, *, block_rows=None):
    """x: (..., D). gamma, beta: (D,). Returns LayerNorm(x) with same shape/dtype."""
    orig_shape = x.shape
    d = orig_shape[-1]
    rows = 1
    for s in orig_shape[:-1]:
        rows *= s
    x2 = x.reshape(rows, d)
    itemsize = jnp.dtype(x.dtype).itemsize

    pad_d = (d % LANE != 0) and (d < PAD_D_BELOW)
    d_block = _round_up(d, LANE) if pad_d else d

    vmem_limit = _vmem_limit_bytes()
    if block_rows is None:
        block_rows = _pick_block_rows(rows, d_block, x.dtype, vmem_limit)
    grid = _cdiv(rows, block_rows)

    row_spec = pl.BlockSpec((block_rows, d_block), lambda i: (i, 0))
    resident_spec = pl.BlockSpec((1, d_block), lambda i: (0, 0))

    cost = pl.CostEstimate(
        flops=7 * rows * d,
        transcendentals=rows,
        bytes_accessed=2 * rows * d * itemsize + 2 * d * 4,
    )
    cparams = pltpu.CompilerParams(
        dimension_semantics=("parallel",),
        vmem_limit_bytes=int(vmem_limit),
    )

    if pad_d:
        pad = d_block - d
        x2 = jnp.pad(x2, ((0, 0), (0, pad)))
        g2 = jnp.pad(gamma.astype(jnp.float32), (0, pad)).reshape(1, d_block)
        b2 = jnp.pad(beta.astype(jnp.float32), (0, pad)).reshape(1, d_block)
        m2 = jnp.pad(jnp.ones((d,), jnp.float32), (0, pad)).reshape(1, d_block)
        out = pl.pallas_call(
            functools.partial(_ln_kernel_masked, d_valid=d),
            out_shape=jax.ShapeDtypeStruct((rows, d_block), x.dtype),
            grid_spec=pl.GridSpec(
                grid=(grid,),
                in_specs=[row_spec, resident_spec, resident_spec, resident_spec],
                out_specs=row_spec,
            ),
            compiler_params=cparams,
            cost_estimate=cost,
        )(x2, g2, b2, m2)
        out = out[:, :d]
    else:
        g2 = gamma.reshape(1, d_block)
        b2 = beta.reshape(1, d_block)
        out = pl.pallas_call(
            _ln_kernel,
            out_shape=jax.ShapeDtypeStruct((rows, d_block), x.dtype),
            grid_spec=pl.GridSpec(
                grid=(grid,),
                in_specs=[row_spec, resident_spec, resident_spec],
                out_specs=row_spec,
            ),
            compiler_params=cparams,
            cost_estimate=cost,
        )(x2, g2, b2)

    return out.reshape(orig_shape)


def my_layernorm_ref(x, gamma, beta):
    xf = x.astype(jnp.float32)
    mean = jnp.mean(xf, axis=-1, keepdims=True)
    var = jnp.mean((xf - mean) ** 2, axis=-1, keepdims=True)
    y = (xf - mean) * lax.rsqrt(var + EPS)
    return (y * gamma + beta).astype(x.dtype)


if __name__ == "__main__":
    key = jax.random.PRNGKey(0)
    kx, kg, kb, kx2, kx3 = jax.random.split(key, 5)

    # Small shape implied by the module: (B, S, DimEmb) token embeddings.
    # DimEmb=32 exercises the tiny-D lane-padded + masked path.
    B, S, DimEmb = 2, 8, 32
    x = jax.random.normal(kx, (B, S, DimEmb), dtype=jnp.float32)
    # nn.LayerNorm default init is weight=1, bias=0; perturb so affine is exercised.
    gamma = jnp.ones((DimEmb,), jnp.float32) + 0.1 * jax.random.normal(kg, (DimEmb,), jnp.float32)
    beta = 0.1 * jax.random.normal(kb, (DimEmb,), jnp.float32)

    # self.Fn is None by default -> forward is just LayerNorm(x).
    out = jax.block_until_ready(my_layernorm(x, gamma, beta))
    ref = my_layernorm_ref(x, gamma, beta)
    assert out.shape == x.shape and out.dtype == x.dtype
    assert jnp.max(jnp.abs(out - ref)) < 1e-5, "mismatch vs reference (small case)"

    # Larger shape: rows % block_rows != 0 (ragged tail block handled without any
    # wrapper-side row pad/slice), D a multiple of 128 (lane-dense, unpadded path).
    B2, S2, D2 = 4, 1000, 384
    x2 = jax.random.normal(kx2, (B2, S2, D2), dtype=jnp.float32)
    g2 = jnp.ones((D2,), jnp.float32) + 0.05 * jax.random.normal(kg, (D2,), jnp.float32)
    b2 = 0.05 * jax.random.normal(kb, (D2,), jnp.float32)
    out2 = jax.block_until_ready(my_layernorm(x2, g2, b2))
    ref2 = my_layernorm_ref(x2, g2, b2)
    assert out2.shape == x2.shape and out2.dtype == x2.dtype
    assert jnp.max(jnp.abs(out2 - ref2)) < 1e-4, "mismatch vs reference (large case)"

    # Unaligned larger D (>= 256, not a multiple of 128): no D padding — the block
    # last dim equals the full array dim and only the tail vregs use masked stores.
    B3, S3, D3 = 2, 100, 300
    x3 = jax.random.normal(kx3, (B3, S3, D3), dtype=jnp.float32)
    g3 = jnp.ones((D3,), jnp.float32) + 0.05 * jax.random.normal(kg, (D3,), jnp.float32)
    b3 = 0.05 * jax.random.normal(kb, (D3,), jnp.float32)
    out3 = jax.block_until_ready(my_layernorm(x3, g3, b3))
    ref3 = my_layernorm_ref(x3, g3, b3)
    assert out3.shape == x3.shape and out3.dtype == x3.dtype
    assert jnp.max(jnp.abs(out3 - ref3)) < 1e-4, "mismatch vs reference (unaligned-D case)"

    # TODO(synk): self.Fn is an arbitrary user callable (None in this config); not
    # representable generically inside the kernel, so it is left out.
    print("KERNEL_OK")
</pallas_src>

<mosaic_0001>
module attributes {stable_mosaic.version = 11 : i64} {
  func.func @_ln_kernel_masked(%arg0: i32, %arg1: memref<8x128xf32, #tpu.memory_space<vmem>>, %arg2: memref<1x128xf32, #tpu.memory_space<vmem>>, %arg3: memref<1x128xf32, #tpu.memory_space<vmem>>, %arg4: memref<1x128xf32, #tpu.memory_space<vmem>>, %arg5: memref<8x128xf32, #tpu.memory_space<vmem>>) attributes {dimension_semantics = [#tpu.dimension_semantics<parallel>], iteration_bounds = array<i64: 2>, scalar_prefetch = 0 : i64, scratch_operands = 0 : i64, tpu.core_type = #tpu.core_type<tc>, window_params = [{transform_indices = @transform_0, window_bounds = array<i64: 8, 128>}, {pipeline_mode = #tpu.pipeline_mode<synchronous>, transform_indices = @transform_1, window_bounds = array<i64: 1, 128>}, {pipeline_mode = #tpu.pipeline_mode<synchronous>, transform_indices = @transform_2, window_bounds = array<i64: 1, 128>}, {pipeline_mode = #tpu.pipeline_mode<synchronous>, transform_indices = @transform_3, window_bounds = array<i64: 1, 128>}, {transform_indices = @transform_4, window_bounds = array<i64: 8, 128>}]} {
    %c0 = arith.constant 0 : index
    %c0_0 = arith.constant 0 : index
    %0 = vector.load %arg1[%c0, %c0_0] : memref<8x128xf32, #tpu.memory_space<vmem>>, vector<8x128xf32>
    %cst = arith.constant dense<0.000000e+00> : vector<8xf32>
    %1 = vector.multi_reduction <add>, %0, %cst [1] : vector<8x128xf32> to vector<8xf32>
    %2 = vector.shape_cast %1 : vector<8xf32> to vector<8x1xf32>
    %cst_1 = arith.constant 3.125000e-02 : f32
    %3 = vector.broadcast %cst_1 : f32 to vector<8x1xf32>
    %4 = arith.mulf %2, %3 : vector<8x1xf32>
    %5 = vector.broadcast %4 : vector<8x1xf32> to vector<8x128xf32>
    %6 = arith.subf %0, %5 : vector<8x128xf32>
    %c0_2 = arith.constant 0 : index
    %c0_3 = arith.constant 0 : index
    %7 = vector.load %arg4[%c0_2, %c0_3] : memref<1x128xf32, #tpu.memory_space<vmem>>, vector<1x128xf32>
    %8 = vector.broadcast %7 : vector<1x128xf32> to vector<8x128xf32>
    %9 = arith.mulf %6, %8 : vector<8x128xf32>
    %10 = arith.mulf %9, %9 : vector<8x128xf32>
    %cst_4 = arith.constant dense<0.000000e+00> : vector<8xf32>
    %11 = vector.multi_reduction <add>, %10, %cst_4 [1] : vector<8x128xf32> to vector<8xf32>
    %12 = vector.shape_cast %11 : vector<8xf32> to vector<8x1xf32>
    %cst_5 = arith.constant 3.125000e-02 : f32
    %13 = vector.broadcast %cst_5 : f32 to vector<8x1xf32>
    %14 = arith.mulf %12, %13 : vector<8x1xf32>
    %cst_6 = arith.constant 9.99999974E-6 : f32
    %15 = vector.broadcast %cst_6 : f32 to vector<8x1xf32>
    %16 = arith.addf %14, %15 : vector<8x1xf32>
    %17 = math.rsqrt %16 : vector<8x1xf32>
    %18 = vector.broadcast %17 : vector<8x1xf32> to vector<8x128xf32>
    %19 = arith.mulf %9, %18 : vector<8x128xf32>
    %c0_7 = arith.constant 0 : index
    %c0_8 = arith.constant 0 : index
    %20 = vector.load %arg2[%c0_7, %c0_8] : memref<1x128xf32, #tpu.memory_space<vmem>>, vector<1x128xf32>
    %21 = vector.broadcast %20 : vector<1x128xf32> to vector<8x128xf32>
    %22 = arith.mulf %19, %21 : vector<8x128xf32>
    %c0_9 = arith.constant 0 : index
    %c0_10 = arith.constant 0 : index
    %23 = vector.load %arg3[%c0_9, %c0_10] : memref<1x128xf32, #tpu.memory_space<vmem>>, vector<1x128xf32>
    %24 = vector.broadcast %23 : vector<1x128xf32> to vector<8x128xf32>
    %25 = arith.addf %22, %24 : vector<8x128xf32>
    %c0_11 = arith.constant 0 : index
    %c0_12 = arith.constant 0 : index
    %26 = vector.load %arg5[%c0_11, %c0_12] : memref<8x128xf32, #tpu.memory_space<vmem>>, vector<8x128xf32>
    tpu.vector_store %arg5[%c0_11, %c0_12], %25 {strides = array<i32>} : memref<8x128xf32, #tpu.memory_space<vmem>>, vector<8x128xf32>,
    return
  }
  func.func @transform_0(%arg0: i32) -> (i32, i32) {
    %c0_i32 = arith.constant 0 : i32
    %c0_i32_0 = arith.constant 0 : i32
    return %arg0, %c0_i32 : i32, i32
  }
  func.func @transform_1(%arg0: i32) -> (i32, i32) {
    %c0_i32 = arith.constant 0 : i32
    %c0_i32_0 = arith.constant 0 : i32
    %c0_i32_1 = arith.constant 0 : i32
    return %c0_i32, %c0_i32_0 : i32, i32
  }
  func.func @transform_2(%arg0: i32) -> (i32, i32) {
    %c0_i32 = arith.constant 0 : i32
    %c0_i32_0 = arith.constant 0 : i32
    %c0_i32_1 = arith.constant 0 : i32
    return %c0_i32, %c0_i32_0 : i32, i32
  }
  func.func @transform_3(%arg0: i32) -> (i32, i32) {
    %c0_i32 = arith.constant 0 : i32
    %c0_i32_0 = arith.constant 0 : i32
    %c0_i32_1 = arith.constant 0 : i32
    return %c0_i32, %c0_i32_0 : i32, i32
  }
  func.func @transform_4(%arg0: i32) -> (i32, i32) {
    %c0_i32 = arith.constant 0 : i32
    %c0_i32_0 = arith.constant 0 : i32
    return %arg0, %c0_i32 : i32, i32
  }
}

</mosaic_0001>

<llo_original>
// kernel: my_layernorm.1
$region0: #{my_layernorm.1}
  #allocation0 [shape = 'u32[]', space=smem, size = 0x4, offset = 0x4, fixed_abs, tag = 'smem constant byte address 0x4 - core index']
  #allocation1 [shape = 'u32[144,128]{1,0:T(1,128)}', space=vmem, size = 0x12000, scoped, tag = 'internal scratch']
  %s0 = inlined_call_operand.vmem [shape: f32[16,128], index: 0, kind: input, shape index: {}]
  %s1 = inlined_call_operand.vmem [shape: f32[1,128], index: 1, kind: input, shape index: {}]
  %s2 = inlined_call_operand.vmem [shape: f32[1,128], index: 2, kind: input, shape index: {}]
  %s3 = inlined_call_operand.vmem [shape: f32[1,128], index: 3, kind: input, shape index: {}]
  %s4 = inlined_call_operand.vmem [shape: f32[16,128], index: 4, kind: output, shape index: {}]
  %s5 = sld [smem:[#allocation0]]
  $region49: #{my_layernorm.1} parent=0
    _
  %s7 = ssub.s32 1, %s5
  %s8 = scalar_select 0, %s7, %s5
  loop: start=0, step=1, limit=4
  $region2: #{my_layernorm.1} parent=0 // loop_pre_header
    _
  $region3: #{my_layernorm.1} parent=0 // loop_header
    %s10 = sphi 0, %s14
    %p11 = scmp.ge.s32.totalorder %s10, 4
    %s20 = sphi 0, %s22
    %s23 = sphi 0, %s20
    %s24 = sphi 0, %s23
    %s40 = sphi 0, %s24
    %s44 = sphi 0, %s44
    %s46 = sphi 0, %s44
    %s47 = sphi 0, %s46
    %s61 = sphi 0, %s47
    %s65 = sphi 0, %s65
    %s67 = sphi 0, %s65
    %s68 = sphi 0, %s67
    %s82 = sphi 0, %s68
    %s86 = sphi 0, %s86
    %s88 = sphi 0, %s86
    %s89 = sphi 0, %s88
    %s103 = sphi 0, %s89
    %s109 = sphi 0, %s111
    %s112 = sphi 0, %s109
    %s113 = sphi 0, %s112
    %s129 = sphi 0, %s113
  $region4: #{my_layernorm.1} parent=0 // loop_header_branch
    %13 = sbr.rel (%p11) target = $region8
  $region5: #{my_layernorm.1} parent=0 // loop_body
    %s15 = ssub.s32 %s10, 1
    %s16 = ssub.s32 %s10, 2
    %s17 = sadd.s32 %s10, 1
    %s18 = ssub.s32 %s10, %s17
    %p19 = scmp.eq.s32.totalorder %s18, 0
    %s21 = sadd.s32 %s20, 1
    %s22 = scalar_select %p19, %s20, %s21
    %p25 = pneg %p19
    %p26 = scmp.eq.s32.totalorder %s10, 1
    %p27 = por %p25, %p26
    %p28 = scmp.ne.s32.totalorder %s20, %s23
    %p29 = scmp.eq.s32.totalorder %s10, 0
    %p30 = por %p28, %p29
    %p31 = scmp.ne.s32.totalorder %s20, %s23
    %p32 = scmp.eq.s32.totalorder %s15, 1
    %p33 = por %p31, %p32
    %p34 = scmp.ne.s32.totalorder %s23, %s24
    %p35 = scmp.eq.s32.totalorder %s15, 0
    %p36 = por %p34, %p35
    %p37 = scmp.ne.s32.totalorder %s23, %s24
    %p38 = scmp.eq.s32.totalorder %s16, 1
    %p39 = por %p37, %p38
    %p41 = scmp.ne.s32.totalorder %s24, %s40
    %p42 = scmp.eq.s32.totalorder %s16, 0
    %p43 = por %p41, %p42
    %s45 = sadd.s32 %s44, 1
    %p48 = scmp.eq.s32.totalorder %s10, 1
    %p49 = scmp.ne.s32.totalorder %s44, %s46
    %p50 = scmp.eq.s32.totalorder %s10, 0
    %p51 = por %p49, %p50
    %p52 = scmp.ne.s32.totalorder %s44, %s46
    %p53 = scmp.eq.s32.totalorder %s15, 1
    %p54 = por %p52, %p53
    %p55 = scmp.ne.s32.totalorder %s46, %s47
    %p56 = scmp.eq.s32.totalorder %s15, 0
    %p57 = por %p55, %p56
    %p58 = scmp.ne.s32.totalorder %s46, %s47
    %p59 = scmp.eq.s32.totalorder %s16, 1
    %p60 = por %p58, %p59
    %p62 = scmp.ne.s32.totalorder %s47, %s61
    %p63 = scmp.eq.s32.totalorder %s16, 0
    %p64 = por %p62, %p63
    %s66 = sadd.s32 %s65, 1
    %p69 = scmp.eq.s32.totalorder %s10, 1
    %p70 = scmp.ne.s32.totalorder %s65, %s67
    %p71 = scmp.eq.s32.totalorder %s10, 0
    %p72 = por %p70, %p71
    %p73 = scmp.ne.s32.totalorder %s65, %s67
    %p74 = scmp.eq.s32.totalorder %s15, 1
    %p75 = por %p73, %p74
    %p76 = scmp.ne.s32.totalorder %s67, %s68
    %p77 = scmp.eq.s32.totalorder %s15, 0
    %p78 = por %p76, %p77
    %p79 = scmp.ne.s32.totalorder %s67, %s68
    %p80 = scmp.eq.s32.totalorder %s16, 1
    %p81 = por %p79, %p80
    %p83 = scmp.ne.s32.totalorder %s68, %s82
    %p84 = scmp.eq.s32.totalorder %s16, 0
    %p85 = por %p83, %p84
    %s87 = sadd.s32 %s86, 1
    %p90 = scmp.eq.s32.totalorder %s10, 1
    %p91 = scmp.ne.s32.totalorder %s86, %s88
    %p92 = scmp.eq.s32.totalorder %s10, 0
    %p93 = por %p91, %p92
    %p94 = scmp.ne.s32.totalorder %s86, %s88
    %p95 = scmp.eq.s32.totalorder %s15, 1
    %p96 = por %p94, %p95
    %p97 = scmp.ne.s32.totalorder %s88, %s89
    %p98 = scmp.eq.s32.totalorder %s15, 0
    %p99 = por %p97, %p98
    %p100 = scmp.ne.s32.totalorder %s88, %s89
    %p101 = scmp.eq.s32.totalorder %s16, 1
    %p102 = por %p100, %p101
    %p104 = scmp.ne.s32.totalorder %s89, %s103
    %p105 = scmp.eq.s32.totalorder %s16, 0
    %p106 = por %p104, %p105
    %s107 = ssub.s32 %s10, %s17
    %p108 = scmp.eq.s32.totalorder %s107, 0
    %s110 = sadd.s32 %s109, 1
    %s111 = scalar_select %p108, %s109, %s110
    %p114 = pneg %p108
    %p115 = scmp.eq.s32.totalorder %s10, 1
    %p116 = por %p114, %p115
    %p117 = scmp.ne.s32.totalorder %s109, %s112
    %p118 = scmp.eq.s32.totalorder %s10, 0
    %p119 = por %p117, %p118
    %p120 = scmp.ne.s32.totalorder %s109, %s112
    %p121 = scmp.eq.s32.totalorder %s15, 1
    %p122 = por %p120, %p121
    %p123 = scmp.ne.s32.totalorder %s112, %s113
    %p124 = scmp.eq.s32.totalorder %s15, 0
    %p125 = por %p123, %p124
    %p126 = scmp.ne.s32.totalorder %s112, %s113
    %p127 = scmp.eq.s32.totalorder %s16, 1
    %p128 = por %p126, %p127
    %p130 = scmp.ne.s32.totalorder %s113, %s129
    %p131 = scmp.eq.s32.totalorder %s16, 0
    %p132 = por %p130, %p131
    %p133 = scmp.le.s32.totalorder 1, %s10
    %p134 = scmp.lt.s32.totalorder %s10, 3
    %p135 = pnand %p133, %p134
    %p136 = pneg %p135
    // Predicated region
    $region9: #{my_layernorm.1} parent=5 // pred_check
      _
    $region10: #{my_layernorm.1} parent=5 // pred_check_branch
      %138 = sbr.rel (%p135) target = $region12
    $region11: #{my_layernorm.1} parent=5 // pred_region
      %s139 = ssub.s32 %s10, 1
      // Predicated region
      $region13: #{my_layernorm.1} parent=11 // pred_check
        %p140 = pneg %p57
      $region14: #{my_layernorm.1} parent=11 // pred_check_branch
        %142 = sbr.rel (%p140) target = $region16
      $region15: #{my_layernorm.1} parent=11 // pred_region
        _
      $region16: #{my_layernorm.1} parent=11 // pred_fallthru
        _
      // Predicated region
      $region17: #{my_layernorm.1} parent=11 // pred_check
        %p143 = pneg %p78
      $region18: #{my_layernorm.1} parent=11 // pred_check_branch
        %145 = sbr.rel (%p143) target = $region20
      $region19: #{my_layernorm.1} parent=11 // pred_region
        _
      $region20: #{my_layernorm.1} parent=11 // pred_fallthru
        _
      // Predicated region
      $region21: #{my_layernorm.1} parent=11 // pred_check
        %p146 = pneg %p99
      $region22: #{my_layernorm.1} parent=11 // pred_check_branch
        %148 = sbr.rel (%p146) target = $region24
      $region23: #{my_layernorm.1} parent=11 // pred_region
        _
      $region24: #{my_layernorm.1} parent=11 // pred_fallthru
        _
    $region12: #{my_layernorm.1} parent=5 // pred_fallthru
      _
    %p149 = scmp.lt.s32.totalorder %s10, 2
    // Predicated region
    $region25: #{my_layernorm.1} parent=5 // pred_check
      %p150 = pneg %p149
    $region26: #{my_layernorm.1} parent=5 // pred_check_branch
      %152 = sbr.rel (%p150) target = $region28
    $region27: #{my_layernorm.1} parent=5 // pred_region
      // Predicated region
      $region29: #{my_layernorm.1} parent=27 // pred_check
        %p153 = pneg %p30
      $region30: #{my_layernorm.1} parent=27 // pred_check_branch
        %155 = sbr.rel (%p153) target = $region32
      $region31: #{my_layernorm.1} parent=27 // pred_region
        %p156 = scmp.lt.s32.totalorder %s10, 1
        %s157 = scalar_select %p156, %s10, 1
        %s158 = smul.addr %s157, 8
        %s159 = scalar_lea.vmem %s0, %s158
      $region32: #{my_layernorm.1} parent=27 // pred_fallthru
        _
    $region28: #{my_layernorm.1} parent=5 // pred_fallthru
      _
    %p160 = scmp.le.s32.totalorder 1, %s10
    %p161 = scmp.lt.s32.totalorder %s10, 3
    %p162 = pnand %p160, %p161
    %p163 = pneg %p162
    // Predicated region
    $region33: #{my_layernorm.1} parent=5 // pred_check
      _
    $region34: #{my_layernorm.1} parent=5 // pred_check_branch
      %165 = sbr.rel (%p162) target = $region36
    $region35: #{my_layernorm.1} parent=5 // pred_region
      %s166 = ssub.s32 %s10, 1
      %p167 = scmp.lt.s32.totalorder %s15, 1
      %s168 = scalar_select %p167, %s15, 1
      %s169 = smul.addr %s168, 8
      %s170 = scalar_lea.vmem %s0, %s169
      %p171 = pneg %p36
      %p172 = pneg %p33
      %p173 = pneg %p57
      %p174 = pneg %p54
      %p175 = pneg %p78
      %p176 = pneg %p75
      %p177 = pneg %p99
      %p178 = pneg %p96
      %p179 = pneg %p125
      %p180 = pneg %p122
      %p181 = scmp.lt.s32.totalorder %s15, 1
      %s182 = scalar_select %p181, %s15, 1
      %s183 = smul.addr %s182, 8
      %s184 = scalar_lea.vmem %s4, %s183
      %p185 = scmp.lt.s32.totalorder %s15, 1
      %s186 = scalar_select %p185, %s15, 1
      %s187 = smul.addr %s186, 8
      %s188 = scalar_lea.vmem %s0, %s187
      %p189 = scmp.lt.s32.totalorder %s15, 1
      %s190 = scalar_select %p189, %s15, 1
      %s191 = smul.addr %s190, 8
      %s192 = scalar_lea.vmem %s4, %s191
      %v193 = vld [vmem:[%s188] sm:$0xff]
      %194 = vadd.xlane.f32.xlu0 %v193
      %v195 = vpop.xlane.xlu0 %194
      %v196 = vmul.f32 %v195, 0.03125
      %v197 = vsub.f32 %v193, %v196
      %v198 = vld [vmem:[%s3] sm:$0x1]
      %v200 = vlaneseq
      %v201 = vshrl.u32 %v200, 7
      %v202 = vsub.s32 0, %v201
      %v203 = vrot.slane %v198, %v202
      %v205 = vmul.f32 %v197, %v203
      %v206 = vmul.f32 %v205, %v205
      %207 = vadd.xlane.f32.xlu0 %v206
      %v208 = vpop.xlane.xlu0 %207
      %v209 = vmul.f32 %v208, 0.03125
      %v210 = vadd.f32 %v209, 1e-05
      %v211 = vrsqrt.pop %v210
      %v212 = vmul.f32 %v205, %v211
      %v213 = vld [vmem:[%s1] sm:$0x1]
      %v215 = vlaneseq
      %v216 = vshrl.u32 %v215, 7
      %v217 = vsub.s32 0, %v216
      %v218 = vrot.slane %v213, %v217
      %v220 = vmul.f32 %v212, %v218
      %v221 = vld [vmem:[%s2] sm:$0x1]
      %v223 = vlaneseq
      %v224 = vshrl.u32 %v223, 7
      %v225 = vsub.s32 0, %v224
      %v226 = vrot.slane %v221, %v225
      %v228 = vadd.f32 %v220, %v226
      %229 = vst [vmem:[%s192] sm:$0xff] %v228
      %p230 = scmp.lt.s32.totalorder %s15, 1
      %s231 = scalar_select %p230, %s15, 1
      %s232 = smul.addr %s231, 8
      %s233 = scalar_lea.vmem %s4, %s232
      // Predicated region
      $region37: #{my_layernorm.1} parent=35 // pred_check
        %p234 = pneg %p122
      $region38: #{my_layernorm.1} parent=35 // pred_check_branch
        %236 = sbr.rel (%p234) target = $region40
      $region39: #{my_layernorm.1} parent=35 // pred_region
        _
      $region40: #{my_layernorm.1} parent=35 // pred_fallthru
        _
    $region36: #{my_layernorm.1} parent=5 // pred_fallthru
      _
    %p237 = scmp.le.s32.totalorder 2, %s10
    // Predicated region
    $region41: #{my_layernorm.1} parent=5 // pred_check
      %p238 = pneg %p237
    $region42: #{my_layernorm.1} parent=5 // pred_check_branch
      %240 = sbr.rel (%p238) target = $region44
    $region43: #{my_layernorm.1} parent=5 // pred_region
      %s241 = ssub.s32 %s10, 2
      // Predicated region
      $region45: #{my_layernorm.1} parent=43 // pred_check
        %p242 = pneg %p128
      $region46: #{my_layernorm.1} parent=43 // pred_check_branch
        %244 = sbr.rel (%p242) target = $region48
      $region47: #{my_layernorm.1} parent=43 // pred_region
        %p245 = scmp.lt.s32.totalorder %s16, 1
        %s246 = scalar_select %p245, %s16, 1
        %s247 = smul.addr %s246, 8
        %s248 = scalar_lea.vmem %s4, %s247
      $region48: #{my_layernorm.1} parent=43 // pred_fallthru
        _
    $region44: #{my_layernorm.1} parent=5 // pred_fallthru
      _
  $region6: #{my_layernorm.1} parent=0 // loop_footer
    %s14 = sadd.s32 1, %s10
  $region7: #{my_layernorm.1} parent=0 // loop_footer_branch
    %9 = sbr.rel target = $region3
  $region8: #{my_layernorm.1} parent=0 // loop_exit
    _

</llo_original>
